<compile_context>
chip_gen: v5e
topology: v5e:2x2
jax: 0.10.0
libtpu: 0.0.40
codegen_flags: <defaults>
</compile_context>

<pallas_src>
import functools

import jax
import jax.numpy as jnp
from jax.experimental import pallas as pl
from jax.experimental.pallas import tpu as pltpu

LANE = 128          # lane width: every hidden/output feature dim padded to this
DESIRED_TB = 512    # upper bound on batch-tile rows per grid step


def _round_up(n, m):
    return ((n + m - 1) // m) * m


def _pick_batch_tile(batch):
    """Largest tile <= DESIRED_TB that still leaves >= 2 balanced, sublane-aligned
    grid steps (so both v7x TensorCores get work); v5e/v6e just see fewer steps."""
    half = _round_up(pl.cdiv(batch, 2), 8)
    return max(8, min(DESIRED_TB, half))


def _make_mlp_kernel(num_layers):
    """Fused kernel: x @ W1 + b1 -> ReLU -> ... -> x @ Wn + bn."""
    def kernel(*refs):
        x_ref = refs[0]
        o_ref = refs[-1]
        h = x_ref[...].astype(jnp.bfloat16)          # in-kernel bf16 cast of the tile
        acc = None
        for li in range(num_layers):
            w_ref = refs[1 + 2 * li]
            b_ref = refs[2 + 2 * li]
            # bf16 MXU matmul, f32 accumulator.
            acc = jnp.dot(h, w_ref[...], preferred_element_type=jnp.float32)
            acc = acc + b_ref[...]                   # f32 bias add (VPU)
            if li < num_layers - 1:
                h = jnp.maximum(acc, 0.0).astype(jnp.bfloat16)  # f32 ReLU -> bf16 MXU operand
        o_ref[...] = acc.astype(o_ref.dtype)         # bf16 lane-dense store
    return kernel


def pack_params(params):
    """One-time packing (call once, outside the forward): pad feature dims to
    lane multiples and cast weights to bf16 / biases to f32 rows.

    Invariant: padded weight columns and padded bias lanes are zero, so padded
    activation columns stay exactly zero through every ReLU layer; padded
    weight rows of the next layer then only ever multiply zeros."""
    out_dims = [_round_up(w.shape[1], LANE) for w, _ in params]
    in_dims = [params[0][0].shape[0]] + out_dims[:-1]   # first in-dim unpadded (matches raw x)
    packed = []
    for (w, b), pin, pout in zip(params, in_dims, out_dims):
        w_p = jnp.pad(w, ((0, pin - w.shape[0]), (0, pout - w.shape[1])))
        b_p = jnp.pad(b, (0, pout - b.shape[0]))
        packed.append((w_p.astype(jnp.bfloat16),
                       b_p.astype(jnp.float32).reshape(1, -1)))
    return packed


@functools.partial(jax.jit, static_argnames=("num_classes",))
def mlp_forward(x, packed_params, num_classes):
    """x: (B, input_dim) f32.  packed_params: list of
    (W_pad bf16 (in, out_pad), b_pad f32 (1, out_pad)) from pack_params().
    Returns (B, num_classes) bf16 logits."""
    B, d_in = x.shape
    tb = _pick_batch_tile(B)

    const_map = lambda i: (0, 0)                 # weights/biases stay VMEM-resident
    flat_params, param_specs = [], []
    for w_p, b_p in packed_params:
        flat_params += [w_p, b_p]
        param_specs += [pl.BlockSpec(w_p.shape, const_map),
                        pl.BlockSpec(b_p.shape, const_map)]
    out_pad = packed_params[-1][0].shape[1]

    out_p = pl.pallas_call(
        _make_mlp_kernel(len(packed_params)),
        out_shape=jax.ShapeDtypeStruct((B, out_pad), jnp.bfloat16),
        grid=(pl.cdiv(B, tb),),
        in_specs=[pl.BlockSpec((tb, d_in), lambda i: (i, 0))] + param_specs,
        out_specs=pl.BlockSpec((tb, out_pad), lambda i: (i, 0)),
        compiler_params=pltpu.CompilerParams(
            dimension_semantics=("parallel",),
            vmem_limit_bytes=32 * 1024 * 1024),
    )(x, *flat_params)

    return out_p[:, :num_classes]


def init_params(key, layer_sizes):
    """Deterministic init mimicking nn.Linear's uniform(-1/sqrt(in), 1/sqrt(in))."""
    params = []
    for in_f, out_f in zip(layer_sizes[:-1], layer_sizes[1:]):
        key, kw, kb = jax.random.split(key, 3)
        bound = 1.0 / (in_f ** 0.5)
        # stored transposed as (in, out) so the kernel computes x @ W (no XLU transpose)
        w = jax.random.uniform(kw, (in_f, out_f), jnp.float32, -bound, bound)
        b = jax.random.uniform(kb, (out_f,), jnp.float32, -bound, bound)
        params.append((w, b))
    return params


if __name__ == "__main__":
    # MLP(input_dim=32, num_classes=10, hidden_layer_sizes=[64, 32])
    input_dim = 32
    hidden_layer_sizes = [64, 32]
    num_classes = 10
    batch = 200          # -> TB=104: two balanced grid steps (both v7x cores engaged)

    key = jax.random.PRNGKey(0)
    kx, kp = jax.random.split(key)
    x = jax.random.normal(kx, (batch, input_dim), jnp.float32)
    params = init_params(kp, [input_dim] + hidden_layer_sizes + [num_classes])
    packed = pack_params(params)     # one-time padding/cast, NOT per forward call

    out = jax.block_until_ready(mlp_forward(x, packed, num_classes=num_classes))
    assert out.shape == (batch, num_classes)
    assert out.dtype == jnp.bfloat16

    # Reference in plain JAX using the same bf16-operand / f32-accumulate math.
    ref = x
    for i, (w, b) in enumerate(params):
        ref = jnp.dot(ref.astype(jnp.bfloat16), w.astype(jnp.bfloat16),
                      preferred_element_type=jnp.float32) + b
        if i < len(params) - 1:
            ref = jnp.maximum(ref, 0.0)
    out_f32 = out.astype(jnp.float32)
    err = float(jnp.max(jnp.abs(out_f32 - ref)))
    assert jnp.allclose(out_f32, ref, atol=2e-2, rtol=2e-2), err

    print("KERNEL_OK")
</pallas_src>

<mosaic_0001>
module attributes {stable_mosaic.version = 11 : i64} {
  func.func @kernel(%arg0: i32, %arg1: memref<104x32xf32, #tpu.memory_space<vmem>>, %arg2: memref<32x128xbf16, #tpu.memory_space<vmem>>, %arg3: memref<1x128xf32, #tpu.memory_space<vmem>>, %arg4: memref<128x128xbf16, #tpu.memory_space<vmem>>, %arg5: memref<1x128xf32, #tpu.memory_space<vmem>>, %arg6: memref<128x128xbf16, #tpu.memory_space<vmem>>, %arg7: memref<1x128xf32, #tpu.memory_space<vmem>>, %arg8: memref<104x128xbf16, #tpu.memory_space<vmem>>) attributes {dimension_semantics = [#tpu.dimension_semantics<parallel>], iteration_bounds = array<i64: 2>, scalar_prefetch = 0 : i64, scratch_operands = 0 : i64, tpu.core_type = #tpu.core_type<tc>, window_params = [{transform_indices = @transform_0, window_bounds = array<i64: 104, 32>}, {pipeline_mode = #tpu.pipeline_mode<synchronous>, transform_indices = @transform_1, window_bounds = array<i64: 32, 128>}, {pipeline_mode = #tpu.pipeline_mode<synchronous>, transform_indices = @transform_2, window_bounds = array<i64: 1, 128>}, {pipeline_mode = #tpu.pipeline_mode<synchronous>, transform_indices = @transform_3, window_bounds = array<i64: 128, 128>}, {pipeline_mode = #tpu.pipeline_mode<synchronous>, transform_indices = @transform_4, window_bounds = array<i64: 1, 128>}, {pipeline_mode = #tpu.pipeline_mode<synchronous>, transform_indices = @transform_5, window_bounds = array<i64: 128, 128>}, {pipeline_mode = #tpu.pipeline_mode<synchronous>, transform_indices = @transform_6, window_bounds = array<i64: 1, 128>}, {transform_indices = @transform_7, window_bounds = array<i64: 104, 128>}]} {
    %c0 = arith.constant 0 : index
    %c0_0 = arith.constant 0 : index
    %0 = vector.load %arg1[%c0, %c0_0] : memref<104x32xf32, #tpu.memory_space<vmem>>, vector<104x32xf32>
    %1 = arith.truncf %0 : vector<104x32xf32> to vector<104x32xbf16>
    %c0_1 = arith.constant 0 : index
    %c0_2 = arith.constant 0 : index
    %2 = vector.load %arg2[%c0_1, %c0_2] : memref<32x128xbf16, #tpu.memory_space<vmem>>, vector<32x128xbf16>
    %cst = arith.constant dense<0.000000e+00> : vector<104x128xf32>
    %3 = tpu.matmul %1, %2, %cst {dimension_numbers = #tpu.dot_dimension_numbers<[1], [0], [0], [1], [0, 0, 1, 1], [], []>} : vector<104x32xbf16>, vector<32x128xbf16>, vector<104x128xf32> -> vector<104x128xf32>
    %c0_3 = arith.constant 0 : index
    %c0_4 = arith.constant 0 : index
    %4 = vector.load %arg3[%c0_3, %c0_4] : memref<1x128xf32, #tpu.memory_space<vmem>>, vector<1x128xf32>
    %5 = vector.broadcast %4 : vector<1x128xf32> to vector<104x128xf32>
    %6 = arith.addf %3, %5 : vector<104x128xf32>
    %cst_5 = arith.constant 0.000000e+00 : f32
    %7 = vector.broadcast %cst_5 : f32 to vector<104x128xf32>
    %8 = arith.maximumf %6, %7 : vector<104x128xf32>
    %9 = arith.truncf %8 : vector<104x128xf32> to vector<104x128xbf16>
    %c0_6 = arith.constant 0 : index
    %c0_7 = arith.constant 0 : index
    %10 = vector.load %arg4[%c0_6, %c0_7] : memref<128x128xbf16, #tpu.memory_space<vmem>>, vector<128x128xbf16>
    %cst_8 = arith.constant dense<0.000000e+00> : vector<104x128xf32>
    %11 = tpu.matmul %9, %10, %cst_8 {dimension_numbers = #tpu.dot_dimension_numbers<[1], [0], [0], [1], [0, 0, 1, 1], [], []>} : vector<104x128xbf16>, vector<128x128xbf16>, vector<104x128xf32> -> vector<104x128xf32>
    %c0_9 = arith.constant 0 : index
    %c0_10 = arith.constant 0 : index
    %12 = vector.load %arg5[%c0_9, %c0_10] : memref<1x128xf32, #tpu.memory_space<vmem>>, vector<1x128xf32>
    %13 = vector.broadcast %12 : vector<1x128xf32> to vector<104x128xf32>
    %14 = arith.addf %11, %13 : vector<104x128xf32>
    %cst_11 = arith.constant 0.000000e+00 : f32
    %15 = vector.broadcast %cst_11 : f32 to vector<104x128xf32>
    %16 = arith.maximumf %14, %15 : vector<104x128xf32>
    %17 = arith.truncf %16 : vector<104x128xf32> to vector<104x128xbf16>
    %c0_12 = arith.constant 0 : index
    %c0_13 = arith.constant 0 : index
    %18 = vector.load %arg6[%c0_12, %c0_13] : memref<128x128xbf16, #tpu.memory_space<vmem>>, vector<128x128xbf16>
    %cst_14 = arith.constant dense<0.000000e+00> : vector<104x128xf32>
    %19 = tpu.matmul %17, %18, %cst_14 {dimension_numbers = #tpu.dot_dimension_numbers<[1], [0], [0], [1], [0, 0, 1, 1], [], []>} : vector<104x128xbf16>, vector<128x128xbf16>, vector<104x128xf32> -> vector<104x128xf32>
    %c0_15 = arith.constant 0 : index
    %c0_16 = arith.constant 0 : index
    %20 = vector.load %arg7[%c0_15, %c0_16] : memref<1x128xf32, #tpu.memory_space<vmem>>, vector<1x128xf32>
    %21 = vector.broadcast %20 : vector<1x128xf32> to vector<104x128xf32>
    %22 = arith.addf %19, %21 : vector<104x128xf32>
    %23 = arith.truncf %22 : vector<104x128xf32> to vector<104x128xbf16>
    %c0_17 = arith.constant 0 : index
    %c0_18 = arith.constant 0 : index
    %24 = vector.load %arg8[%c0_17, %c0_18] : memref<104x128xbf16, #tpu.memory_space<vmem>>, vector<104x128xbf16>
    tpu.vector_store %arg8[%c0_17, %c0_18], %23 {strides = array<i32>} : memref<104x128xbf16, #tpu.memory_space<vmem>>, vector<104x128xbf16>,
    return
  }
  func.func @transform_0(%arg0: i32) -> (i32, i32) {
    %c0_i32 = arith.constant 0 : i32
    %c0_i32_0 = arith.constant 0 : i32
    return %arg0, %c0_i32 : i32, i32
  }
  func.func @transform_1(%arg0: i32) -> (i32, i32) {
    %c0_i32 = arith.constant 0 : i32
    %c0_i32_0 = arith.constant 0 : i32
    %c0_i32_1 = arith.constant 0 : i32
    return %c0_i32, %c0_i32_0 : i32, i32
  }
  func.func @transform_2(%arg0: i32) -> (i32, i32) {
    %c0_i32 = arith.constant 0 : i32
    %c0_i32_0 = arith.constant 0 : i32
    %c0_i32_1 = arith.constant 0 : i32
    return %c0_i32, %c0_i32_0 : i32, i32
  }
  func.func @transform_3(%arg0: i32) -> (i32, i32) {
    %c0_i32 = arith.constant 0 : i32
    %c0_i32_0 = arith.constant 0 : i32
    %c0_i32_1 = arith.constant 0 : i32
    return %c0_i32, %c0_i32_0 : i32, i32
  }
  func.func @transform_4(%arg0: i32) -> (i32, i32) {
    %c0_i32 = arith.constant 0 : i32
    %c0_i32_0 = arith.constant 0 : i32
    %c0_i32_1 = arith.constant 0 : i32
    return %c0_i32, %c0_i32_0 : i32, i32
  }
  func.func @transform_5(%arg0: i32) -> (i32, i32) {
    %c0_i32 = arith.constant 0 : i32
    %c0_i32_0 = arith.constant 0 : i32
    %c0_i32_1 = arith.constant 0 : i32
    return %c0_i32, %c0_i32_0 : i32, i32
  }
  func.func @transform_6(%arg0: i32) -> (i32, i32) {
    %c0_i32 = arith.constant 0 : i32
    %c0_i32_0 = arith.constant 0 : i32
    %c0_i32_1 = arith.constant 0 : i32
    return %c0_i32, %c0_i32_0 : i32, i32
  }
  func.func @transform_7(%arg0: i32) -> (i32, i32) {
    %c0_i32 = arith.constant 0 : i32
    %c0_i32_0 = arith.constant 0 : i32
    return %arg0, %c0_i32 : i32, i32
  }
}

</mosaic_0001>

<llo_original>
// kernel: mlp_forward.1
$region0: #{mlp_forward.1}
  #allocation0 [shape = 'u32[]', space=smem, size = 0x4, offset = 0x4, fixed_abs, tag = 'smem constant byte address 0x4 - core index']
  #allocation1 [shape = 'u32[72,128]{1,0:T(1,128)}', space=vmem, size = 0x9000, scoped, tag = 'internal scratch']
  %s0 = inlined_call_operand.vmem [shape: f32[200,32], index: 0, kind: input, shape index: {}]
  %s1 = inlined_call_operand.vmem [shape: bf16[32,128], index: 1, kind: input, shape index: {}]
  %s2 = inlined_call_operand.vmem [shape: f32[1,128], index: 2, kind: input, shape index: {}]
  %s3 = inlined_call_operand.vmem [shape: bf16[128,128], index: 3, kind: input, shape index: {}]
  %s4 = inlined_call_operand.vmem [shape: f32[1,128], index: 4, kind: input, shape index: {}]
  %s5 = inlined_call_operand.vmem [shape: bf16[128,128], index: 5, kind: input, shape index: {}]
  %s6 = inlined_call_operand.vmem [shape: f32[1,128], index: 6, kind: input, shape index: {}]
  %s7 = inlined_call_operand.vmem [shape: bf16[200,128], index: 7, kind: output, shape index: {}]
  %s8 = sld [smem:[#allocation0]]
  $region105: #{mlp_forward.1} parent=0
    _
  %s10 = ssub.s32 1, %s8
  %s11 = scalar_select 0, %s10, %s8
  $region1: #{mlp_forward.1} parent=0
    #allocation2 [shape = 'u8[53248]{0}', space=vmem, size = 0xd000, scoped, tag = 'output window, operand 0']
    loop: start=0, step=1, limit=4
    $region2: #{mlp_forward.1} parent=1 // loop_pre_header
      _
    $region3: #{mlp_forward.1} parent=1 // loop_header
      %s13 = sphi 0, %s17
      %p14 = scmp.ge.s32.totalorder %s13, 4
      %s23 = sphi 0, %s25
      %s26 = sphi 0, %s23
      %s27 = sphi 0, %s26
      %s43 = sphi 0, %s27
      %s47 = sphi 0, %s47
      %s49 = sphi 0, %s47
      %s50 = sphi 0, %s49
      %s64 = sphi 0, %s50
      %s68 = sphi 0, %s68
      %s70 = sphi 0, %s68
      %s71 = sphi 0, %s70
      %s85 = sphi 0, %s71
      %s89 = sphi 0, %s89
      %s91 = sphi 0, %s89
      %s92 = sphi 0, %s91
      %s106 = sphi 0, %s92
      %s110 = sphi 0, %s110
      %s112 = sphi 0, %s110
      %s113 = sphi 0, %s112
      %s127 = sphi 0, %s113
      %s131 = sphi 0, %s131
      %s133 = sphi 0, %s131
      %s134 = sphi 0, %s133
      %s148 = sphi 0, %s134
      %s152 = sphi 0, %s152
      %s154 = sphi 0, %s152
      %s155 = sphi 0, %s154
      %s169 = sphi 0, %s155
      %s175 = sphi 0, %s177
      %s178 = sphi 0, %s175
      %s179 = sphi 0, %s178
      %s195 = sphi 0, %s179
    $region4: #{mlp_forward.1} parent=1 // loop_header_branch
      %16 = sbr.rel (%p14) target = $region8
    $region5: #{mlp_forward.1} parent=1 // loop_body
      %s18 = ssub.s32 %s13, 1
      %s19 = ssub.s32 %s13, 2
      %s20 = sadd.s32 %s13, 1
      %s21 = ssub.s32 %s13, %s20
      %p22 = scmp.eq.s32.totalorder %s21, 0
      %s24 = sadd.s32 %s23, 1
      %s25 = scalar_select %p22, %s23, %s24
      %p28 = pneg %p22
      %p29 = scmp.eq.s32.totalorder %s13, 1
      %p30 = por %p28, %p29
      %p31 = scmp.ne.s32.totalorder %s23, %s26
      %p32 = scmp.eq.s32.totalorder %s13, 0
      %p33 = por %p31, %p32
      %p34 = scmp.ne.s32.totalorder %s23, %s26
      %p35 = scmp.eq.s32.totalorder %s18, 1
      %p36 = por %p34, %p35
      %p37 = scmp.ne.s32.totalorder %s26, %s27
      %p38 = scmp.eq.s32.totalorder %s18, 0
      %p39 = por %p37, %p38
      %p40 = scmp.ne.s32.totalorder %s26, %s27
      %p41 = scmp.eq.s32.totalorder %s19, 1
      %p42 = por %p40, %p41
      %p44 = scmp.ne.s32.totalorder %s27, %s43
      %p45 = scmp.eq.s32.totalorder %s19, 0
      %p46 = por %p44, %p45
      %s48 = sadd.s32 %s47, 1
      %p51 = scmp.eq.s32.totalorder %s13, 1
      %p52 = scmp.ne.s32.totalorder %s47, %s49
      %p53 = scmp.eq.s32.totalorder %s13, 0
      %p54 = por %p52, %p53
      %p55 = scmp.ne.s32.totalorder %s47, %s49
      %p56 = scmp.eq.s32.totalorder %s18, 1
      %p57 = por %p55, %p56
      %p58 = scmp.ne.s32.totalorder %s49, %s50
      %p59 = scmp.eq.s32.totalorder %s18, 0
      %p60 = por %p58, %p59
      %p61 = scmp.ne.s32.totalorder %s49, %s50
      %p62 = scmp.eq.s32.totalorder %s19, 1
      %p63 = por %p61, %p62
      %p65 = scmp.ne.s32.totalorder %s50, %s64
      %p66 = scmp.eq.s32.totalorder %s19, 0
      %p67 = por %p65, %p66
      %s69 = sadd.s32 %s68, 1
      %p72 = scmp.eq.s32.totalorder %s13, 1
      %p73 = scmp.ne.s32.totalorder %s68, %s70
      %p74 = scmp.eq.s32.totalorder %s13, 0
      %p75 = por %p73, %p74
      %p76 = scmp.ne.s32.totalorder %s68, %s70
      %p77 = scmp.eq.s32.totalorder %s18, 1
      %p78 = por %p76, %p77
      %p79 = scmp.ne.s32.totalorder %s70, %s71
      %p80 = scmp.eq.s32.totalorder %s18, 0
      %p81 = por %p79, %p80
      %p82 = scmp.ne.s32.totalorder %s70, %s71
      %p83 = scmp.eq.s32.totalorder %s19, 1
      %p84 = por %p82, %p83
      %p86 = scmp.ne.s32.totalorder %s71, %s85
      %p87 = scmp.eq.s32.totalorder %s19, 0
      %p88 = por %p86, %p87
      %s90 = sadd.s32 %s89, 1
      %p93 = scmp.eq.s32.totalorder %s13, 1
      %p94 = scmp.ne.s32.totalorder %s89, %s91
      %p95 = scmp.eq.s32.totalorder %s13, 0
      %p96 = por %p94, %p95
      %p97 = scmp.ne.s32.totalorder %s89, %s91
      %p98 = scmp.eq.s32.totalorder %s18, 1
      %p99 = por %p97, %p98
      %p100 = scmp.ne.s32.totalorder %s91, %s92
      %p101 = scmp.eq.s32.totalorder %s18, 0
      %p102 = por %p100, %p101
      %p103 = scmp.ne.s32.totalorder %s91, %s92
      %p104 = scmp.eq.s32.totalorder %s19, 1
      %p105 = por %p103, %p104
      %p107 = scmp.ne.s32.totalorder %s92, %s106
      %p108 = scmp.eq.s32.totalorder %s19, 0
      %p109 = por %p107, %p108
      %s111 = sadd.s32 %s110, 1
      %p114 = scmp.eq.s32.totalorder %s13, 1
      %p115 = scmp.ne.s32.totalorder %s110, %s112
      %p116 = scmp.eq.s32.totalorder %s13, 0
      %p117 = por %p115, %p116
      %p118 = scmp.ne.s32.totalorder %s110, %s112
      %p119 = scmp.eq.s32.totalorder %s18, 1
      %p120 = por %p118, %p119
      %p121 = scmp.ne.s32.totalorder %s112, %s113
      %p122 = scmp.eq.s32.totalorder %s18, 0
      %p123 = por %p121, %p122
      %p124 = scmp.ne.s32.totalorder %s112, %s113
      %p125 = scmp.eq.s32.totalorder %s19, 1
      %p126 = por %p124, %p125
      %p128 = scmp.ne.s32.totalorder %s113, %s127
      %p129 = scmp.eq.s32.totalorder %s19, 0
      %p130 = por %p128, %p129
      %s132 = sadd.s32 %s131, 1
      %p135 = scmp.eq.s32.totalorder %s13, 1
      %p136 = scmp.ne.s32.totalorder %s131, %s133
      %p137 = scmp.eq.s32.totalorder %s13, 0
      %p138 = por %p136, %p137
      %p139 = scmp.ne.s32.totalorder %s131, %s133
      %p140 = scmp.eq.s32.totalorder %s18, 1
      %p141 = por %p139, %p140
      %p142 = scmp.ne.s32.totalorder %s133, %s134
      %p143 = scmp.eq.s32.totalorder %s18, 0
      %p144 = por %p142, %p143
      %p145 = scmp.ne.s32.totalorder %s133, %s134
      %p146 = scmp.eq.s32.totalorder %s19, 1
      %p147 = por %p145, %p146
      %p149 = scmp.ne.s32.totalorder %s134, %s148
      %p150 = scmp.eq.s32.totalorder %s19, 0
      %p151 = por %p149, %p150
      %s153 = sadd.s32 %s152, 1
      %p156 = scmp.eq.s32.totalorder %s13, 1
      %p157 = scmp.ne.s32.totalorder %s152, %s154
      %p158 = scmp.eq.s32.totalorder %s13, 0
      %p159 = por %p157, %p158
      %p160 = scmp.ne.s32.totalorder %s152, %s154
      %p161 = scmp.eq.s32.totalorder %s18, 1
      %p162 = por %p160, %p161
      %p163 = scmp.ne.s32.totalorder %s154, %s155
      %p164 = scmp.eq.s32.totalorder %s18, 0
      %p165 = por %p163, %p164
      %p166 = scmp.ne.s32.totalorder %s154, %s155
      %p167 = scmp.eq.s32.totalorder %s19, 1
      %p168 = por %p166, %p167
      %p170 = scmp.ne.s32.totalorder %s155, %s169
      %p171 = scmp.eq.s32.totalorder %s19, 0
      %p172 = por %p170, %p171
      %s173 = ssub.s32 %s13, %s20
      %p174 = scmp.eq.s32.totalorder %s173, 0
      %s176 = sadd.s32 %s175, 1
      %s177 = scalar_select %p174, %s175, %s176
      %p180 = pneg %p174
      %p181 = scmp.eq.s32.totalorder %s13, 1
      %p182 = por %p180, %p181
      %p183 = scmp.ne.s32.totalorder %s175, %s178
      %p184 = scmp.eq.s32.totalorder %s13, 0
      %p185 = por %p183, %p184
      %p186 = scmp.ne.s32.totalorder %s175, %s178
      %p187 = scmp.eq.s32.totalorder %s18, 1
      %p188 = por %p186, %p187
      %p189 = scmp.ne.s32.totalorder %s178, %s179
      %p190 = scmp.eq.s32.totalorder %s18, 0
      %p191 = por %p189, %p190
      %p192 = scmp.ne.s32.totalorder %s178, %s179
      %p193 = scmp.eq.s32.totalorder %s19, 1
      %p194 = por %p192, %p193
      %p196 = scmp.ne.s32.totalorder %s179, %s195
      %p197 = scmp.eq.s32.totalorder %s19, 0
      %p198 = por %p196, %p197
      %p199 = scmp.le.s32.totalorder 1, %s13
      %p200 = scmp.lt.s32.totalorder %s13, 3
      %p201 = pnand %p199, %p200
      %p202 = pneg %p201
      // Predicated region
      $region9: #{mlp_forward.1} parent=5 // pred_check
        _
      $region10: #{mlp_forward.1} parent=5 // pred_check_branch
        %204 = sbr.rel (%p201) target = $region12
      $region11: #{mlp_forward.1} parent=5 // pred_region
        %s205 = ssub.s32 %s13, 1
        // Predicated region
        $region13: #{mlp_forward.1} parent=11 // pred_check
          %p206 = pneg %p60
        $region14: #{mlp_forward.1} parent=11 // pred_check_branch
          %208 = sbr.rel (%p206) target = $region16
        $region15: #{mlp_forward.1} parent=11 // pred_region
          _
        $region16: #{mlp_forward.1} parent=11 // pred_fallthru
          _
        // Predicated region
        $region17: #{mlp_forward.1} parent=11 // pred_check
          %p209 = pneg %p81
        $region18: #{mlp_forward.1} parent=11 // pred_check_branch
          %211 = sbr.rel (%p209) target = $region20
        $region19: #{mlp_forward.1} parent=11 // pred_region
          _
        $region20: #{mlp_forward.1} parent=11 // pred_fallthru
          _
        // Predicated region
        $region21: #{mlp_forward.1} parent=11 // pred_check
          %p212 = pneg %p102
        $region22: #{mlp_forward.1} parent=11 // pred_check_branch
          %214 = sbr.rel (%p212) target = $region24
        $region23: #{mlp_forward.1} parent=11 // pred_region
          _
        $region24: #{mlp_forward.1} parent=11 // pred_fallthru
          _
        // Predicated region
        $region25: #{mlp_forward.1} parent=11 // pred_check
          %p215 = pneg %p123
        $region26: #{mlp_forward.1} parent=11 // pred_check_branch
          %217 = sbr.rel (%p215) target = $region28
        $region27: #{mlp_forward.1} parent=11 // pred_region
          _
        $region28: #{mlp_forward.1} parent=11 // pred_fallthru
          _
        // Predicated region
        $region29: #{mlp_forward.1} parent=11 // pred_check
          %p218 = pneg %p144
        $region30: #{mlp_forward.1} parent=11 // pred_check_branch
          %220 = sbr.rel (%p218) target = $region32
        $region31: #{mlp_forward.1} parent=11 // pred_region
          _
        $region32: #{mlp_forward.1} parent=11 // pred_fallthru
          _
        // Predicated region
        $region33: #{mlp_forward.1} parent=11 // pred_check
          %p221 = pneg %p165
        $region34: #{mlp_forward.1} parent=11 // pred_check_branch
          %223 = sbr.rel (%p221) target = $region36
        $region35: #{mlp_forward.1} parent=11 // pred_region
          _
        $region36: #{mlp_forward.1} parent=11 // pred_fallthru
          _
      $region12: #{mlp_forward.1} parent=5 // pred_fallthru
        _
      %p224 = scmp.lt.s32.totalorder %s13, 2
      // Predicated region
      $region37: #{mlp_forward.1} parent=5 // pred_check
        %p225 = pneg %p224
      $region38: #{mlp_forward.1} parent=5 // pred_check_branch
        %227 = sbr.rel (%p225) target = $region40
      $region39: #{mlp_forward.1} parent=5 // pred_region
        // Predicated region
        $region41: #{mlp_forward.1} parent=39 // pred_check
          %p228 = pneg %p33
        $region42: #{mlp_forward.1} parent=39 // pred_check_branch
          %230 = sbr.rel (%p228) target = $region44
        $region43: #{mlp_forward.1} parent=39 // pred_region
          %s231 = smul.u32 13, %s13
          %s232 = ssub.s32 25, %s231
          %p233 = scmp.lt.s32.totalorder %s232, 13
          %s234 = scalar_select %p233, %s232, 13
          %s235 = smul.u32 8, %s234
          %p236 = scmp.lt.s32.totalorder %s231, 24
          %s237 = scalar_select %p236, %s231, 24
          %s238 = smul.addr %s237, 8
          %s239 = scalar_lea.vmem %s0, %s238
          %s240 = smul.u32 13, %s13
          %s241 = ssub.s32 25, %s240
          %p242 = scmp.lt.s32.totalorder %s241, 13
          %s243 = scalar_select %p242, %s241, 13
          %s244 = smul.u32 8, %s243
        $region44: #{mlp_forward.1} parent=39 // pred_fallthru
          _
      $region40: #{mlp_forward.1} parent=5 // pred_fallthru
        _
      %p245 = scmp.le.s32.totalorder 1, %s13
      %p246 = scmp.lt.s32.totalorder %s13, 3
      %p247 = pnand %p245, %p246
      %p248 = pneg %p247
      // Predicated region
      $region45: #{mlp_forward.1} parent=5 // pred_check
        _
      $region46: #{mlp_forward.1} parent=5 // pred_check_branch
        %250 = sbr.rel (%p247) target = $region48
      $region47: #{mlp_forward.1} parent=5 // pred_region
        %s251 = ssub.s32 %s13, 1
        %s252 = smul.u32 13, %s18
        %s253 = ssub.s32 25, %s252
        %p254 = scmp.lt.s32.totalorder %s253, 13
        %s255 = scalar_select %p254, %s253, 13
        %s256 = smul.u32 8, %s255
        %p257 = scmp.lt.s32.totalorder %s252, 24
        %s258 = scalar_select %p257, %s252, 24
        %s259 = smul.addr %s258, 8
        %s260 = scalar_lea.vmem %s0, %s259
        %p261 = pneg %p39
        %p262 = pneg %p36
        %p263 = pneg %p60
        %p264 = pneg %p57
        %p265 = pneg %p81
        %p266 = pneg %p78
        %p267 = pneg %p102
        %p268 = pneg %p99
        %p269 = pneg %p123
        %p270 = pneg %p120
        %p271 = pneg %p144
        %p272 = pneg %p141
        %p273 = pneg %p165
        %p274 = pneg %p162
        %p275 = pneg %p191
        %p276 = pneg %p188
        %s277 = sand.u32 %s178, 1
        %s278 = sand.u32 %s178, 1
        %s279 = smul.addr %s278, 52
        %s280 = scalar_lea.vmem [#allocation2], %s279
        %s281 = smul.u32 13, %s18
        %s282 = ssub.s32 25, %s281
        %p283 = scmp.lt.s32.totalorder %s282, 13
        %s284 = scalar_select %p283, %s282, 13
        %s285 = smul.u32 8, %s284
        %p286 = scmp.lt.s32.totalorder %s281, 24
        %s287 = scalar_select %p286, %s281, 24
        %s288 = smul.addr %s287, 8
        %s289 = scalar_lea.vmem %s0, %s288
        %s290 = smul.u32 13, %s18
        %s291 = ssub.s32 25, %s290
        %p292 = scmp.lt.s32.totalorder %s291, 13
        %s293 = scalar_select %p292, %s291, 13
        %s294 = smul.u32 8, %s293
        %s295 = smul.u32 13, %s18
        %s296 = ssub.s32 25, %s295
        %p297 = scmp.lt.s32.totalorder %s296, 13
        %s298 = scalar_select %p297, %s296, 13
        %s299 = smul.u32 4, %s298
        %v301 = vld [vmem:[%s289] sm:$0xff]
        %v302 = vld [vmem:[%s289 + $0x8] sm:$0xff]
        %v303 = vld [vmem:[%s289 + $0x10] sm:$0xff]
        %v304 = vld [vmem:[%s289 + $0x18] sm:$0xff]
        %v305 = vld [vmem:[%s289 + $0x20] sm:$0xff]
        %v306 = vld [vmem:[%s289 + $0x28] sm:$0xff]
        %v307 = vld [vmem:[%s289 + $0x30] sm:$0xff]
        %v308 = vld [vmem:[%s289 + $0x38] sm:$0xff]
        %v309 = vld [vmem:[%s289 + $0x40] sm:$0xff]
        %v310 = vld [vmem:[%s289 + $0x48] sm:$0xff]
        %v311 = vld [vmem:[%s289 + $0x50] sm:$0xff]
        %v312 = vld [vmem:[%s289 + $0x58] sm:$0xff]
        %v313 = vld [vmem:[%s289 + $0x60] sm:$0xff]
        %v314 = vpack.c.bf16 %v302, %v301
        %v315 = vpack.c.bf16 %v304, %v303
        %v316 = vpack.c.bf16 %v306, %v305
        %v317 = vpack.c.bf16 %v308, %v307
        %v318 = vpack.c.bf16 %v310, %v309
        %v319 = vpack.c.bf16 %v312, %v311
        %v320 = vpack.c.bf16 %v313, %v313
        %v321 = vld [vmem:[%s1] sm:$0xf]
        %v322 = vld [vmem:[%s1 + $0x4] sm:$0xf]
        %v323 = vld [vmem:[%s1 + $0x8] sm:$0xf]
        %v324 = vld [vmem:[%s1 + $0xc] sm:$0xf]
        %v325 = vld [vmem:[%s2] sm:$0x1]
        %v327 = vperm.slane %v325, 0
        %v333 = vunpack.c.l.b16 %v321
        %v334 = vunpack.c.l.b16 %v322
        %v335 = vunpack.c.l.b16 %v323
        %v336 = vunpack.c.l.b16 %v324
        %v337 = vpack.c.b16 %v334, %v333
        %v338 = vpack.c.b16 %v336, %v335
        %vm341 = vcmask 261120
        %v343 = vsel %vm341, %v314, 0
        %v346 = vsel %vm341, %v315, 0
        %v349 = vsel %vm341, %v316, 0
        %v352 = vsel %vm341, %v317, 0
        %v355 = vsel %vm341, %v318, 0
        %v358 = vsel %vm341, %v319, 0
        %v361 = vsel %vm341, %v320, 0
        %363 = vmatpush.bf16.msra.mxu0 0
        %364 = vmatpush.bf16.msra.mxu0 0
        %365 = vmatpush.bf16.msra.mxu0 0
        %366 = vmatpush.bf16.msra.mxu0 0
        %367 = vmatpush.bf16.msra.mxu0 0
        %368 = vmatpush.bf16.msra.mxu0 0
        %369 = vmatpush.bf16.msra.mxu0 %v338
        %370 = vmatpush.bf16.msra.mxu0 %v337
        %371 = vmatmul.bf16.gmra.mxu0 %v343
        %v372 = vpop.f32.mrf.mxu0
        %v373 = vadd.f32 %v327, %v372
        %v374 = vpop.f32.mrf.mxu0
        %v375 = vadd.f32 %v327, %v374
        %376 = vmatmul.bf16.gmra.mxu0 %v346
        %v377 = vpop.f32.mrf.mxu0
        %v378 = vadd.f32 %v327, %v377
        %v379 = vpop.f32.mrf.mxu0
        %v380 = vadd.f32 %v327, %v379
        %381 = vmatmul.bf16.gmra.mxu0 %v349
        %v382 = vpop.f32.mrf.mxu0
        %v383 = vadd.f32 %v327, %v382
        %v384 = vpop.f32.mrf.mxu0
        %v385 = vadd.f32 %v327, %v384
        %386 = vmatmul.bf16.gmra.mxu0 %v352
        %v387 = vpop.f32.mrf.mxu0
        %v388 = vadd.f32 %v327, %v387
        %v389 = vpop.f32.mrf.mxu0
        %v390 = vadd.f32 %v327, %v389
        %391 = vmatmul.bf16.gmra.mxu0 %v355
        %v392 = vpop.f32.mrf.mxu0
        %v393 = vadd.f32 %v327, %v392
        %v394 = vpop.f32.mrf.mxu0
        %v395 = vadd.f32 %v327, %v394
        %396 = vmatmul.bf16.gmra.mxu0 %v358
        %v397 = vpop.f32.mrf.mxu0
        %v398 = vadd.f32 %v327, %v397
        %v399 = vpop.f32.mrf.mxu0
        %v400 = vadd.f32 %v327, %v399
        %401 = vmatmul.bf16.gmra.mxu0 %v361
        %v402 = vpop.f32.mrf.mxu0
        %v403 = vadd.f32 %v327, %v402
        %v404 = vpop.f32.mrf.mxu0
        %405 = vdwg.mxu0
        %v406 = vmax.f32 %v373, 0.0
        %v407 = vmax.f32 %v375, 0.0
        %v408 = vmax.f32 %v378, 0.0
        %v409 = vmax.f32 %v380, 0.0
        %v410 = vmax.f32 %v383, 0.0
        %v411 = vmax.f32 %v385, 0.0
        %v412 = vmax.f32 %v388, 0.0
        %v413 = vmax.f32 %v390, 0.0
        %v414 = vmax.f32 %v393, 0.0
        %v415 = vmax.f32 %v395, 0.0
        %v416 = vmax.f32 %v398, 0.0
        %v417 = vmax.f32 %v400, 0.0
        %v418 = vmax.f32 %v403, 0.0
        %v419 = vpack.c.bf16 %v407, %v406
        %v420 = vpack.c.bf16 %v409, %v408
        %v421 = vpack.c.bf16 %v411, %v410
        %v422 = vpack.c.bf16 %v413, %v412
        %v423 = vpack.c.bf16 %v415, %v414
        %v424 = vpack.c.bf16 %v417, %v416
        %v425 = vpack.c.bf16 %v418, %v418
        %v426 = vld [vmem:[%s3] sm:$0xf]
        %v427 = vld [vmem:[%s3 + $0x4] sm:$0xf]
        %v428 = vld [vmem:[%s3 + $0x8] sm:$0xf]
        %v429 = vld [vmem:[%s3 + $0xc] sm:$0xf]
        %v430 = vld [vmem:[%s3 + $0x10] sm:$0xf]
        %v431 = vld [vmem:[%s3 + $0x14] sm:$0xf]
        %v432 = vld [vmem:[%s3 + $0x18] sm:$0xf]
        %v433 = vld [vmem:[%s3 + $0x1c] sm:$0xf]
        %v434 = vld [vmem:[%s3 + $0x20] sm:$0xf]
        %v435 = vld [vmem:[%s3 + $0x24] sm:$0xf]
        %v436 = vld [vmem:[%s3 + $0x28] sm:$0xf]
        %v437 = vld [vmem:[%s3 + $0x2c] sm:$0xf]
        %v438 = vld [vmem:[%s3 + $0x30] sm:$0xf]
        %v439 = vld [vmem:[%s3 + $0x34] sm:$0xf]
        %v440 = vld [vmem:[%s3 + $0x38] sm:$0xf]
        %v441 = vld [vmem:[%s3 + $0x3c] sm:$0xf]
        %v442 = vld [vmem:[%s4] sm:$0x1]
        %v444 = vperm.slane %v442, 0
        %v462 = vunpack.c.l.b16 %v426
        %v463 = vunpack.c.l.b16 %v427
        %v464 = vunpack.c.l.b16 %v428
        %v465 = vunpack.c.l.b16 %v429
        %v466 = vunpack.c.l.b16 %v430
        %v467 = vunpack.c.l.b16 %v431
        %v468 = vunpack.c.l.b16 %v432
        %v469 = vunpack.c.l.b16 %v433
        %v470 = vunpack.c.l.b16 %v434
        %v471 = vunpack.c.l.b16 %v435
        %v472 = vunpack.c.l.b16 %v436
        %v473 = vunpack.c.l.b16 %v437
        %v474 = vunpack.c.l.b16 %v438
        %v475 = vunpack.c.l.b16 %v439
        %v476 = vunpack.c.l.b16 %v440
        %v477 = vunpack.c.l.b16 %v441
        %v478 = vpack.c.b16 %v463, %v462
        %v479 = vpack.c.b16 %v465, %v464
        %v480 = vpack.c.b16 %v467, %v466
        %v481 = vpack.c.b16 %v469, %v468
        %v482 = vpack.c.b16 %v471, %v470
        %v483 = vpack.c.b16 %v473, %v472
        %v484 = vpack.c.b16 %v475, %v474
        %v485 = vpack.c.b16 %v477, %v476
        %494 = vmatpush.bf16.msra.mxu0 %v485
        %495 = vmatpush.bf16.msra.mxu0 %v484
        %496 = vmatpush.bf16.msra.mxu0 %v483
        %497 = vmatpush.bf16.msra.mxu0 %v482
        %498 = vmatpush.bf16.msra.mxu0 %v481
        %499 = vmatpush.bf16.msra.mxu0 %v480
        %500 = vmatpush.bf16.msra.mxu0 %v479
        %501 = vmatpush.bf16.msra.mxu0 %v478
        %502 = vmatmul.bf16.gmra.mxu0 %v419
        %v503 = vpop.f32.mrf.mxu0
        %v504 = vadd.f32 %v444, %v503
        %v505 = vpop.f32.mrf.mxu0
        %v506 = vadd.f32 %v444, %v505
        %507 = vmatmul.bf16.gmra.mxu0 %v420
        %v508 = vpop.f32.mrf.mxu0
        %v509 = vadd.f32 %v444, %v508
        %v510 = vpop.f32.mrf.mxu0
        %v511 = vadd.f32 %v444, %v510
        %512 = vmatmul.bf16.gmra.mxu0 %v421
        %v513 = vpop.f32.mrf.mxu0
        %v514 = vadd.f32 %v444, %v513
        %v515 = vpop.f32.mrf.mxu0
        %v516 = vadd.f32 %v444, %v515
        %517 = vmatmul.bf16.gmra.mxu0 %v422
        %v518 = vpop.f32.mrf.mxu0
        %v519 = vadd.f32 %v444, %v518
        %v520 = vpop.f32.mrf.mxu0
        %v521 = vadd.f32 %v444, %v520
        %522 = vmatmul.bf16.gmra.mxu0 %v423
        %v523 = vpop.f32.mrf.mxu0
        %v524 = vadd.f32 %v444, %v523
        %v525 = vpop.f32.mrf.mxu0
        %v526 = vadd.f32 %v444, %v525
        %527 = vmatmul.bf16.gmra.mxu0 %v424
        %v528 = vpop.f32.mrf.mxu0
        %v529 = vadd.f32 %v444, %v528
        %v530 = vpop.f32.mrf.mxu0
        %v531 = vadd.f32 %v444, %v530
        %532 = vmatmul.bf16.gmra.mxu0 %v425
        %v533 = vpop.f32.mrf.mxu0
        %v534 = vadd.f32 %v444, %v533
        %v535 = vpop.f32.mrf.mxu0
        %536 = vdwg.mxu0
        %v537 = vmax.f32 %v504, 0.0
        %v538 = vmax.f32 %v506, 0.0
        %v539 = vmax.f32 %v509, 0.0
        %v540 = vmax.f32 %v511, 0.0
        %v541 = vmax.f32 %v514, 0.0
        %v542 = vmax.f32 %v516, 0.0
        %v543 = vmax.f32 %v519, 0.0
        %v544 = vmax.f32 %v521, 0.0
        %v545 = vmax.f32 %v524, 0.0
        %v546 = vmax.f32 %v526, 0.0
        %v547 = vmax.f32 %v529, 0.0
        %v548 = vmax.f32 %v531, 0.0
        %v549 = vmax.f32 %v534, 0.0
        %v550 = vpack.c.bf16 %v538, %v537
        %v551 = vpack.c.bf16 %v540, %v539
        %v552 = vpack.c.bf16 %v542, %v541
        %v553 = vpack.c.bf16 %v544, %v543
        %v554 = vpack.c.bf16 %v546, %v545
        %v555 = vpack.c.bf16 %v548, %v547
        %v556 = vpack.c.bf16 %v549, %v549
        %v557 = vld [vmem:[%s5] sm:$0xf]
        %v558 = vld [vmem:[%s5 + $0x4] sm:$0xf]
        %v559 = vld [vmem:[%s5 + $0x8] sm:$0xf]
        %v560 = vld [vmem:[%s5 + $0xc] sm:$0xf]
        %v561 = vld [vmem:[%s5 + $0x10] sm:$0xf]
        %v562 = vld [vmem:[%s5 + $0x14] sm:$0xf]
        %v563 = vld [vmem:[%s5 + $0x18] sm:$0xf]
        %v564 = vld [vmem:[%s5 + $0x1c] sm:$0xf]
        %v565 = vld [vmem:[%s5 + $0x20] sm:$0xf]
        %v566 = vld [vmem:[%s5 + $0x24] sm:$0xf]
        %v567 = vld [vmem:[%s5 + $0x28] sm:$0xf]
        %v568 = vld [vmem:[%s5 + $0x2c] sm:$0xf]
        %v569 = vld [vmem:[%s5 + $0x30] sm:$0xf]
        %v570 = vld [vmem:[%s5 + $0x34] sm:$0xf]
        %v571 = vld [vmem:[%s5 + $0x38] sm:$0xf]
        %v572 = vld [vmem:[%s5 + $0x3c] sm:$0xf]
        %v573 = vld [vmem:[%s6] sm:$0x1]
        %v575 = vperm.slane %v573, 0
        %v593 = vunpack.c.l.b16 %v557
        %v594 = vunpack.c.l.b16 %v558
        %v595 = vunpack.c.l.b16 %v559
        %v596 = vunpack.c.l.b16 %v560
        %v597 = vunpack.c.l.b16 %v561
        %v598 = vunpack.c.l.b16 %v562
        %v599 = vunpack.c.l.b16 %v563
        %v600 = vunpack.c.l.b16 %v564
        %v601 = vunpack.c.l.b16 %v565
        %v602 = vunpack.c.l.b16 %v566
        %v603 = vunpack.c.l.b16 %v567
        %v604 = vunpack.c.l.b16 %v568
        %v605 = vunpack.c.l.b16 %v569
        %v606 = vunpack.c.l.b16 %v570
        %v607 = vunpack.c.l.b16 %v571
        %v608 = vunpack.c.l.b16 %v572
        %v609 = vpack.c.b16 %v594, %v593
        %v610 = vpack.c.b16 %v596, %v595
        %v611 = vpack.c.b16 %v598, %v597
        %v612 = vpack.c.b16 %v600, %v599
        %v613 = vpack.c.b16 %v602, %v601
        %v614 = vpack.c.b16 %v604, %v603
        %v615 = vpack.c.b16 %v606, %v605
        %v616 = vpack.c.b16 %v608, %v607
        %625 = vmatpush.bf16.msra.mxu0 %v616
        %626 = vmatpush.bf16.msra.mxu0 %v615
        %627 = vmatpush.bf16.msra.mxu0 %v614
        %628 = vmatpush.bf16.msra.mxu0 %v613
        %629 = vmatpush.bf16.msra.mxu0 %v612
        %630 = vmatpush.bf16.msra.mxu0 %v611
        %631 = vmatpush.bf16.msra.mxu0 %v610
        %632 = vmatpush.bf16.msra.mxu0 %v609
        %633 = vmatmul.bf16.gmra.mxu0 %v550
        %v634 = vpop.f32.mrf.mxu0
        %v635 = vadd.f32 %v575, %v634
        %v636 = vpop.f32.mrf.mxu0
        %v637 = vadd.f32 %v575, %v636
        %638 = vmatmul.bf16.gmra.mxu0 %v551
        %v639 = vpop.f32.mrf.mxu0
        %v640 = vadd.f32 %v575, %v639
        %v641 = vpop.f32.mrf.mxu0
        %v642 = vadd.f32 %v575, %v641
        %643 = vmatmul.bf16.gmra.mxu0 %v552
        %v644 = vpop.f32.mrf.mxu0
        %v645 = vadd.f32 %v575, %v644
        %v646 = vpop.f32.mrf.mxu0
        %v647 = vadd.f32 %v575, %v646
        %648 = vmatmul.bf16.gmra.mxu0 %v553
        %v649 = vpop.f32.mrf.mxu0
        %v650 = vadd.f32 %v575, %v649
        %v651 = vpop.f32.mrf.mxu0
        %v652 = vadd.f32 %v575, %v651
        %653 = vmatmul.bf16.gmra.mxu0 %v554
        %v654 = vpop.f32.mrf.mxu0
        %v655 = vadd.f32 %v575, %v654
        %v656 = vpop.f32.mrf.mxu0
        %v657 = vadd.f32 %v575, %v656
        %658 = vmatmul.bf16.gmra.mxu0 %v555
        %v659 = vpop.f32.mrf.mxu0
        %v660 = vadd.f32 %v575, %v659
        %v661 = vpop.f32.mrf.mxu0
        %v662 = vadd.f32 %v575, %v661
        %663 = vmatmul.bf16.gmra.mxu0 %v556
        %v664 = vpop.f32.mrf.mxu0
        %v665 = vadd.f32 %v575, %v664
        %v666 = vpop.f32.mrf.mxu0
        %667 = vdwg.mxu0
        %v668 = vpack.c.bf16 %v635, %v635
        %v669 = vpack.c.bf16 %v637, %v637
        %v670 = vpack.c.bf16 %v640, %v640
        %v671 = vpack.c.bf16 %v642, %v642
        %v672 = vpack.c.bf16 %v645, %v645
        %v673 = vpack.c.bf16 %v647, %v647
        %v674 = vpack.c.bf16 %v650, %v650
        %v675 = vpack.c.bf16 %v652, %v652
        %v676 = vpack.c.bf16 %v655, %v655
        %v677 = vpack.c.bf16 %v657, %v657
        %v678 = vpack.c.bf16 %v660, %v660
        %v679 = vpack.c.bf16 %v662, %v662
        %v680 = vpack.c.bf16 %v665, %v665
        %681 = vst [vmem:[%s280] sm:$0xf] %v668
        %682 = vst [vmem:[%s280 + $0x4] sm:$0xf] %v669
        %683 = vst [vmem:[%s280 + $0x8] sm:$0xf] %v670
        %684 = vst [vmem:[%s280 + $0xc] sm:$0xf] %v671
        %685 = vst [vmem:[%s280 + $0x10] sm:$0xf] %v672
        %686 = vst [vmem:[%s280 + $0x14] sm:$0xf] %v673
        %687 = vst [vmem:[%s280 + $0x18] sm:$0xf] %v674
        %688 = vst [vmem:[%s280 + $0x1c] sm:$0xf] %v675
        %689 = vst [vmem:[%s280 + $0x20] sm:$0xf] %v676
        %690 = vst [vmem:[%s280 + $0x24] sm:$0xf] %v677
        %691 = vst [vmem:[%s280 + $0x28] sm:$0xf] %v678
        %692 = vst [vmem:[%s280 + $0x2c] sm:$0xf] %v679
        %693 = vst [vmem:[%s280 + $0x30] sm:$0xf] %v680
        %s694 = sand.u32 %s178, 1
        %s695 = sand.u32 %s178, 1
        %s696 = smul.addr %s695, 52
        %s697 = scalar_lea.vmem [#allocation2], %s696
        // Predicated region
        $region49: #{mlp_forward.1} parent=47 // pred_check
          %p698 = pneg %p188
        $region50: #{mlp_forward.1} parent=47 // pred_check_branch
          %700 = sbr.rel (%p698) target = $region52
        $region51: #{mlp_forward.1} parent=47 // pred_region
          %s701 = smul.u32 13, %s18
          %s702 = ssub.s32 25, %s701
          %p703 = scmp.lt.s32.totalorder %s702, 13
          %s704 = scalar_select %p703, %s702, 13
          %s705 = smul.u32 4, %s704
          %p706 = scmp.ne.s32.totalorder 0, %s705
          %s707 = smul.addr %s701, 4
          %s708 = scalar_lea.vmem %s7, %s707
          // Predicated region
          $region53: #{mlp_forward.1} parent=51 // pred_check
            %p709 = pneg %p706
          $region54: #{mlp_forward.1} parent=51 // pred_check_branch
            %711 = sbr.rel (%p709) target = $region56
          $region55: #{mlp_forward.1} parent=51 // pred_region
            // Predicated region
            $region57: #{mlp_forward.1} parent=55 // pred_check
              _
            $region58: #{mlp_forward.1} parent=55 // pred_check_branch
              %713 = sbr.rel target = $region60
            $region59: #{mlp_forward.1} parent=55 // pred_region
              // Predicated region
              $region79: #{mlp_forward.1} parent=59 // pred_check
                _
              $region80: #{mlp_forward.1} parent=59 // pred_check_branch
                %788 = sbr.rel (0) target = $region82
              $region81: #{mlp_forward.1} parent=59 // pred_region
                %s790 = ssub.s32 16, 1
                %s791 = sdiv.u32.pop %s704, 13
                %s792 = srem.u32.pop %s704, 13
                // While loop
                $region83: #{mlp_forward.1} parent=81 // loop_pre_header
                  _
                $region84: #{mlp_forward.1} parent=81 // loop_header
                  %s794 = sphi 0, %s796
                  %p795 = scmp.ge.s32.totalorder %s794, %s791
                  %s799 = sphi 0, %s830
                  %s800 = sphi %s697, %s833
                  %s801 = sphi %s708, %s834
                $region85: #{mlp_forward.1} parent=81 // loop_header_branch
                  %798 = sbr.rel (%p795) target = $region89
                $region86: #{mlp_forward.1} parent=81 // loop_body
                  %v802 = vld [vmem:[%s800] sm:%s790]
                  %803 = vst [vmem:[%s801] sm:%s790] %v802
                  %v804 = vld [vmem:[%s800 + $0x4] sm:%s790]
                  %805 = vst [vmem:[%s801 + $0x4] sm:%s790] %v804
                  %v806 = vld [vmem:[%s800 + $0x8] sm:%s790]
                  %807 = vst [vmem:[%s801 + $0x8] sm:%s790] %v806
                  %v808 = vld [vmem:[%s800 + $0xc] sm:%s790]
                  %809 = vst [vmem:[%s801 + $0xc] sm:%s790] %v808
                  %v810 = vld [vmem:[%s800 + $0x10] sm:%s790]
                  %811 = vst [vmem:[%s801 + $0x10] sm:%s790] %v810
                  %v812 = vld [vmem:[%s800 + $0x14] sm:%s790]
                  %813 = vst [vmem:[%s801 + $0x14] sm:%s790] %v812
                  %v814 = vld [vmem:[%s800 + $0x18] sm:%s790]
                  %815 = vst [vmem:[%s801 + $0x18] sm:%s790] %v814
                  %v816 = vld [vmem:[%s800 + $0x1c] sm:%s790]
                  %817 = vst [vmem:[%s801 + $0x1c] sm:%s790] %v816
                  %v818 = vld [vmem:[%s800 + $0x20] sm:%s790]
                  %819 = vst [vmem:[%s801 + $0x20] sm:%s790] %v818
                  %v820 = vld [vmem:[%s800 + $0x24] sm:%s790]
                  %821 = vst [vmem:[%s801 + $0x24] sm:%s790] %v820
                  %v822 = vld [vmem:[%s800 + $0x28] sm:%s790]
                  %823 = vst [vmem:[%s801 + $0x28] sm:%s790] %v822
                  %v824 = vld [vmem:[%s800 + $0x2c] sm:%s790]
                  %825 = vst [vmem:[%s801 + $0x2c] sm:%s790] %v824
                  %v826 = vld [vmem:[%s800 + $0x30] sm:%s790]
                  %827 = vst [vmem:[%s801 + $0x30] sm:%s790] %v826
                  %s828 = sadd.s32 1, %s799
                  %p829 = scmp.ge.s32.totalorder %s828, %s791
                  %s830 = scalar_select %p829, 0, %s828
                  %s831 = smul.u32 %s830, 52
                  %s832 = smul.u32 %s830, 52
                  %s833 = scalar_lea.vmem %s697, %s831 [#allocation2]
                  %s834 = scalar_lea.vmem %s708, %s832
                $region87: #{mlp_forward.1} parent=81 // loop_footer
                  %s796 = sadd.s32 %s794, 1
                $region88: #{mlp_forward.1} parent=81 // loop_footer_branch
                  %793 = sbr.rel target = $region84
                $region89: #{mlp_forward.1} parent=81 // loop_exit
                  _
                %s835 = sdiv.u32.pop %s704, 13
                %s836 = srem.u32.pop %s704, 13
                %s837 = smul.u32 %s835, 13
                %s838 = smul.u32 4, %s837
                %s839 = scalar_lea.vmem %s697, %s838 [#allocation2]
                %s840 = smul.u32 4, %s837
                %s841 = scalar_lea.vmem %s708, %s840
                // While loop
                $region90: #{mlp_forward.1} parent=81 // loop_pre_header
                  _
                $region91: #{mlp_forward.1} parent=81 // loop_header
                  %s843 = sphi 0, %s845
                  %p844 = scmp.ge.s32.totalorder %s843, %s836
                  %s848 = sphi 0, %s855
                  %s849 = sphi %s839, %s858
                  %s850 = sphi %s841, %s859
                $region92: #{mlp_forward.1} parent=81 // loop_header_branch
                  %847 = sbr.rel (%p844) target = $region96
                $region93: #{mlp_forward.1} parent=81 // loop_body
                  %v851 = vld [vmem:[%s849] sm:%s790]
                  %852 = vst [vmem:[%s850] sm:%s790] %v851
                  %s853 = sadd.s32 1, %s848
                  %p854 = scmp.ge.s32.totalorder %s853, %s836
                  %s855 = scalar_select %p854, 0, %s853
                  %s856 = smul.u32 %s855, 4
                  %s857 = smul.u32 %s855, 4
                  %s858 = scalar_lea.vmem %s839, %s856 [#allocation2]
                  %s859 = scalar_lea.vmem %s841, %s857
                $region94: #{mlp_forward.1} parent=81 // loop_footer
                  %s845 = sadd.s32 %s843, 1
                $region95: #{mlp_forward.1} parent=81 // loop_footer_branch
                  %842 = sbr.rel target = $region91
                $region96: #{mlp_forward.1} parent=81 // loop_exit
                  _
              $region82: #{mlp_forward.1} parent=59 // pred_fallthru
                _
            $region60: #{mlp_forward.1} parent=55 // pred_fallthru
              _
            // Predicated region
            $region61: #{mlp_forward.1} parent=55 // pred_check
              _
            $region62: #{mlp_forward.1} parent=55 // pred_check_branch
              %715 = sbr.rel (0) target = $region64
            $region63: #{mlp_forward.1} parent=55 // pred_region
              %s717 = ssub.s32 16, 1
              %s718 = sdiv.u32.pop %s704, 13
              %s719 = srem.u32.pop %s704, 13
              // While loop
              $region65: #{mlp_forward.1} parent=63 // loop_pre_header
                _
              $region66: #{mlp_forward.1} parent=63 // loop_header
                %s721 = sphi 0, %s723
                %p722 = scmp.ge.s32.totalorder %s721, %s718
                %s726 = sphi 0, %s757
                %s727 = sphi %s697, %s760
                %s728 = sphi %s708, %s761
              $region67: #{mlp_forward.1} parent=63 // loop_header_branch
                %725 = sbr.rel (%p722) target = $region71
              $region68: #{mlp_forward.1} parent=63 // loop_body
                %v729 = vld [vmem:[%s727] sm:%s717]
                %730 = vst [vmem:[%s728] sm:%s717] %v729
                %v731 = vld [vmem:[%s727 + $0x4] sm:%s717]
                %732 = vst [vmem:[%s728 + $0x4] sm:%s717] %v731
                %v733 = vld [vmem:[%s727 + $0x8] sm:%s717]
                %734 = vst [vmem:[%s728 + $0x8] sm:%s717] %v733
                %v735 = vld [vmem:[%s727 + $0xc] sm:%s717]
                %736 = vst [vmem:[%s728 + $0xc] sm:%s717] %v735
                %v737 = vld [vmem:[%s727 + $0x10] sm:%s717]
                %738 = vst [vmem:[%s728 + $0x10] sm:%s717] %v737
                %v739 = vld [vmem:[%s727 + $0x14] sm:%s717]
                %740 = vst [vmem:[%s728 + $0x14] sm:%s717] %v739
                %v741 = vld [vmem:[%s727 + $0x18] sm:%s717]
                %742 = vst [vmem:[%s728 + $0x18] sm:%s717] %v741
                %v743 = vld [vmem:[%s727 + $0x1c] sm:%s717]
                %744 = vst [vmem:[%s728 + $0x1c] sm:%s717] %v743
                %v745 = vld [vmem:[%s727 + $0x20] sm:%s717]
                %746 = vst [vmem:[%s728 + $0x20] sm:%s717] %v745
                %v747 = vld [vmem:[%s727 + $0x24] sm:%s717]
                %748 = vst [vmem:[%s728 + $0x24] sm:%s717] %v747
                %v749 = vld [vmem:[%s727 + $0x28] sm:%s717]
                %750 = vst [vmem:[%s728 + $0x28] sm:%s717] %v749
                %v751 = vld [vmem:[%s727 + $0x2c] sm:%s717]
                %752 = vst [vmem:[%s728 + $0x2c] sm:%s717] %v751
                %v753 = vld [vmem:[%s727 + $0x30] sm:%s717]
                %754 = vst [vmem:[%s728 + $0x30] sm:%s717] %v753
                %s755 = sadd.s32 1, %s726
                %p756 = scmp.ge.s32.totalorder %s755, %s718
                %s757 = scalar_select %p756, 0, %s755
                %s758 = smul.u32 %s757, 52
                %s759 = smul.u32 %s757, 52
                %s760 = scalar_lea.vmem %s697, %s758 [#allocation2]
                %s761 = scalar_lea.vmem %s708, %s759
              $region69: #{mlp_forward.1} parent=63 // loop_footer
                %s723 = sadd.s32 %s721, 1
              $region70: #{mlp_forward.1} parent=63 // loop_footer_branch
                %720 = sbr.rel target = $region66
              $region71: #{mlp_forward.1} parent=63 // loop_exit
                _
              %s762 = sdiv.u32.pop %s704, 13
              %s763 = srem.u32.pop %s704, 13
              %s764 = smul.u32 %s762, 13
              %s765 = smul.u32 4, %s764
              %s766 = scalar_lea.vmem %s697, %s765 [#allocation2]
              %s767 = smul.u32 4, %s764
              %s768 = scalar_lea.vmem %s708, %s767
              // While loop
              $region72: #{mlp_forward.1} parent=63 // loop_pre_header
                _
              $region73: #{mlp_forward.1} parent=63 // loop_header
                %s770 = sphi 0, %s772
                %p771 = scmp.ge.s32.totalorder %s770, %s763
                %s775 = sphi 0, %s782
                %s776 = sphi %s766, %s785
                %s777 = sphi %s768, %s786
              $region74: #{mlp_forward.1} parent=63 // loop_header_branch
                %774 = sbr.rel (%p771) target = $region78
              $region75: #{mlp_forward.1} parent=63 // loop_body
                %v778 = vld [vmem:[%s776] sm:%s717]
                %779 = vst [vmem:[%s777] sm:%s717] %v778
                %s780 = sadd.s32 1, %s775
                %p781 = scmp.ge.s32.totalorder %s780, %s763
                %s782 = scalar_select %p781, 0, %s780
                %s783 = smul.u32 %s782, 4
                %s784 = smul.u32 %s782, 4
                %s785 = scalar_lea.vmem %s766, %s783 [#allocation2]
                %s786 = scalar_lea.vmem %s768, %s784
              $region76: #{mlp_forward.1} parent=63 // loop_footer
                %s772 = sadd.s32 %s770, 1
              $region77: #{mlp_forward.1} parent=63 // loop_footer_branch
                %769 = sbr.rel target = $region73
              $region78: #{mlp_forward.1} parent=63 // loop_exit
                _
            $region64: #{mlp_forward.1} parent=55 // pred_fallthru
              _
          $region56: #{mlp_forward.1} parent=51 // pred_fallthru
            _
          %860 = vnop
        $region52: #{mlp_forward.1} parent=47 // pred_fallthru
          _
      $region48: #{mlp_forward.1} parent=5 // pred_fallthru
        _
      %p861 = scmp.le.s32.totalorder 2, %s13
      // Predicated region
      $region97: #{mlp_forward.1} parent=5 // pred_check
        %p862 = pneg %p861
      $region98: #{mlp_forward.1} parent=5 // pred_check_branch
        %864 = sbr.rel (%p862) target = $region100
      $region99: #{mlp_forward.1} parent=5 // pred_region
        %s865 = ssub.s32 %s13, 2
        // Predicated region
        $region101: #{mlp_forward.1} parent=99 // pred_check
          %p866 = pneg %p194
        $region102: #{mlp_forward.1} parent=99 // pred_check_branch
          %868 = sbr.rel (%p866) target = $region104
        $region103: #{mlp_forward.1} parent=99 // pred_region
          %s869 = sand.u32 %s179, 1
          %s870 = sand.u32 %s179, 1
          %s871 = smul.addr %s870, 52
          %s872 = scalar_lea.vmem [#allocation2], %s871
        $region104: #{mlp_forward.1} parent=99 // pred_fallthru
          _
      $region100: #{mlp_forward.1} parent=5 // pred_fallthru
        _
    $region6: #{mlp_forward.1} parent=1 // loop_footer
      %s17 = sadd.s32 1, %s13
    $region7: #{mlp_forward.1} parent=1 // loop_footer_branch
      %12 = sbr.rel target = $region3
    $region8: #{mlp_forward.1} parent=1 // loop_exit
      _

</llo_original>
